<compile_context>
chip_gen: v7x
topology: tpu7x:2x2x1
jax: 0.10.0
libtpu: 0.0.40
codegen_flags: <defaults>
</compile_context>

<pallas_src>
import functools

import jax
import jax.numpy as jnp
from jax.experimental import pallas as pl
from jax.experimental.pallas import tpu as pltpu


LANES = 128            # lane width
SUB = 8                # f32 sublane count per vreg
NCORES = 2             # leading "parallel" grid axis (v7x megacore; loops on 1-TC chips)
ALIGN = NCORES * SUB * LANES            # 2048-element bulk alignment
MAX_BLOCK_ROWS = 4096  # (4096,128) f32 = 2 MiB per input per block


def _make_wbce_kernel(wp, wn, tr, rem_rows):
    """wp/wn/tr/rem_rows are plain Python numbers -> baked in as literals.

    (Passing jnp scalars here is what tripped the 'kernel captures constants'
    trace error in the previous version.)
    """

    def _partial_sum(p, t, mask=None):
        if mask is not None:
            # Keep log() finite on out-of-range rows, then zero their term.
            p = jnp.where(mask, p, 0.5)
            t = jnp.where(mask, t, 0.0)
        loss = -(wp * t * jnp.log(p) + wn * (1.0 - t) * jnp.log(1.0 - p))
        if mask is not None:
            loss = jnp.where(mask, loss, 0.0)
        # VALU-only partial reduction: (tr,128) -> (tr/8, 8, 128) -> (8,128).
        return jnp.sum(loss.reshape(tr // SUB, SUB, LANES), axis=0)

    def kernel(p_ref, t_ref, acc_ref):
        """Grid: (core, row-tile).  Refs:
        p_ref, t_ref : (tr, 128) VMEM tiles (leading core dim squeezed)
        acc_ref      : (8, 128)  f32 per-core partial sum, resident across
                       the inner grid axis.
        """
        i = pl.program_id(1)

        @pl.when(i == 0)
        def _():
            acc_ref[...] = jnp.zeros_like(acc_ref)

        if rem_rows == 0:
            # All blocks are full: unmasked fast path only.
            acc_ref[...] += _partial_sum(p_ref[...].astype(jnp.float32),
                                         t_ref[...].astype(jnp.float32))
        else:
            last = pl.num_programs(1) - 1

            @pl.when(i < last)
            def _():
                acc_ref[...] += _partial_sum(p_ref[...].astype(jnp.float32),
                                             t_ref[...].astype(jnp.float32))

            @pl.when(i == last)
            def _():
                rowidx = jax.lax.broadcasted_iota(jnp.int32, (tr, LANES), 0)
                mask = rowidx < rem_rows          # rem_rows is a static literal
                acc_ref[...] += _partial_sum(p_ref[...].astype(jnp.float32),
                                             t_ref[...].astype(jnp.float32),
                                             mask)

    return kernel


@functools.partial(jax.jit, static_argnames=("weight_pos", "weight_neg"))
def weighted_bce_loss(inputs, targets, weight_pos, weight_neg):
    """Pallas TPU implementation of WeightedBCELoss.forward (returns a scalar)."""
    wp = float(weight_pos)
    wn = float(weight_neg)

    p = inputs.reshape(-1)
    t = targets.reshape(-1)
    n = p.shape[0]

    # 2048-aligned bulk goes through the kernel (pure reshape, no pad copy);
    # the <2048-element tail is folded in with plain jnp below.
    n_bulk = (n // ALIGN) * ALIGN
    parts = []

    if n_bulk > 0:
        rows_half = n_bulk // (NCORES * LANES)      # multiple of SUB
        tr = min(MAX_BLOCK_ROWS, rows_half)         # block rows, multiple of 8
        num_blocks = pl.cdiv(rows_half, tr)
        rem_rows = rows_half % tr                   # static; 0 => no mask path

        p3 = p[:n_bulk].reshape(NCORES, rows_half, LANES)
        t3 = t[:n_bulk].reshape(NCORES, rows_half, LANES)
        # TODO(synk): when n % 2048 != 0 XLA materializes the bulk slice; a
        # flat-HBM manual-DMA path would avoid that extra copy.

        partial = pl.pallas_call(
            _make_wbce_kernel(wp, wn, tr, rem_rows),
            out_shape=jax.ShapeDtypeStruct((NCORES, SUB, LANES), jnp.float32),
            grid_spec=pl.GridSpec(
                grid=(NCORES, num_blocks),
                in_specs=[
                    pl.BlockSpec((pl.Squeezed(), tr, LANES),
                                 lambda c, i: (c, i, 0)),
                    pl.BlockSpec((pl.Squeezed(), tr, LANES),
                                 lambda c, i: (c, i, 0)),
                ],
                out_specs=pl.BlockSpec((pl.Squeezed(), SUB, LANES),
                                       lambda c, i: (c, 0, 0)),
            ),
            compiler_params=pltpu.CompilerParams(
                # core axis parallel (v7x 2 TCs), reduction axis sequential
                dimension_semantics=("parallel", "arbitrary"),
                vmem_limit_bytes=48 * 1024 * 1024,
            ),
        )(p3, t3)
        parts.append(jnp.sum(partial))

    if n_bulk < n:
        # Tiny (<2048 element) tail: plain jnp, negligible cost.
        pt = p[n_bulk:].astype(jnp.float32)
        tt = t[n_bulk:].astype(jnp.float32)
        parts.append(jnp.sum(-(wp * tt * jnp.log(pt)
                               + wn * (1.0 - tt) * jnp.log(1.0 - pt))))

    total = parts[0] if len(parts) == 1 else parts[0] + parts[1]
    return total / n


def weighted_bce_loss_ref(inputs, targets, weight_pos, weight_neg):
    """Pure-JAX reference matching the PyTorch module exactly."""
    p = inputs.astype(jnp.float32)
    t = targets.astype(jnp.float32)
    loss = -(weight_pos * t * jnp.log(p)
             + weight_neg * (1.0 - t) * jnp.log(1.0 - p))
    return jnp.mean(loss)


if __name__ == "__main__":
    key = jax.random.PRNGKey(0)
    weight_pos, weight_neg = 2.0, 0.5

    # Primary test: NCHW-shaped inputs, as the PyTorch module would receive.
    # Predictions must lie strictly in (0, 1) for log()/log(1-.) -> sigmoid.
    k1, k2, k3, k4, k5, k6 = jax.random.split(key, 6)
    inputs = jax.nn.sigmoid(jax.random.normal(k1, (2, 4, 16, 16), jnp.float32))
    targets = (jax.random.uniform(k2, (2, 4, 16, 16)) > 0.5).astype(jnp.float32)

    out = weighted_bce_loss(inputs, targets, weight_pos, weight_neg)
    out = jax.block_until_ready(out)
    ref = weighted_bce_loss_ref(inputs, targets, weight_pos, weight_neg)
    assert jnp.allclose(out, ref, rtol=1e-5, atol=1e-6), (out, ref)

    # Exercise the unaligned-tail path (n = 2500: 2048 bulk + 452 tail).
    inputs2 = jax.nn.sigmoid(jax.random.normal(k3, (1, 1, 50, 50), jnp.float32))
    targets2 = (jax.random.uniform(k4, (1, 1, 50, 50)) > 0.5).astype(jnp.float32)
    out2 = weighted_bce_loss(inputs2, targets2, weight_pos, weight_neg)
    ref2 = weighted_bce_loss_ref(inputs2, targets2, weight_pos, weight_neg)
    assert jnp.allclose(out2, ref2, rtol=1e-5, atol=1e-6), (out2, ref2)

    # Exercise the in-kernel masked last block (rows_half=5000 > 4096 block rows).
    inputs3 = jax.nn.sigmoid(jax.random.normal(k5, (4, 8, 200, 200), jnp.float32))
    targets3 = (jax.random.uniform(k6, (4, 8, 200, 200)) > 0.5).astype(jnp.float32)
    out3 = weighted_bce_loss(inputs3, targets3, weight_pos, weight_neg)
    ref3 = weighted_bce_loss_ref(inputs3, targets3, weight_pos, weight_neg)
    assert jnp.allclose(out3, ref3, rtol=1e-4, atol=1e-6), (out3, ref3)

    print("KERNEL_OK")
</pallas_src>

<mosaic_0001>
module attributes {stable_mosaic.version = 11 : i64} {
  func.func @kernel(%arg0: i32, %arg1: i32, %arg2: memref<1x8x128xf32, #tpu.memory_space<vmem>>, %arg3: memref<1x8x128xf32, #tpu.memory_space<vmem>>, %arg4: memref<1x8x128xf32, #tpu.memory_space<vmem>>) attributes {dimension_semantics = [#tpu.dimension_semantics<parallel>, #tpu.dimension_semantics<arbitrary>], iteration_bounds = array<i64: 2, 1>, scalar_prefetch = 0 : i64, scratch_operands = 0 : i64, tpu.core_type = #tpu.core_type<tc>, window_params = [{transform_indices = @transform_0, window_bounds = array<i64: 1, 8, 128>}, {transform_indices = @transform_1, window_bounds = array<i64: 1, 8, 128>}, {transform_indices = @transform_2, window_bounds = array<i64: 1, 8, 128>}]} {
    %c0_i32 = arith.constant 0 : i32
    %0 = arith.cmpi eq, %arg1, %c0_i32 : i32
    %1 = arith.extui %0 : i1 to i32
    %c0_i32_0 = arith.constant 0 : i32
    %2 = arith.cmpi ne, %1, %c0_i32_0 : i32
    scf.if %2 {
      %cst_17 = arith.constant 0.000000e+00 : f32
      %30 = vector.broadcast %cst_17 : f32 to vector<8x128xf32>
      %c0_18 = arith.constant 0 : index
      %c0_19 = arith.constant 0 : index
      %c0_20 = arith.constant 0 : index
      %31 = vector.load %arg4[%c0_18, %c0_19, %c0_20] : memref<1x8x128xf32, #tpu.memory_space<vmem>>, vector<1x8x128xf32>
      %32 = vector.shape_cast %31 : vector<1x8x128xf32> to vector<8x128xf32>
      %33 = vector.shape_cast %30 : vector<8x128xf32> to vector<1x8x128xf32>
      tpu.vector_store %arg4[%c0_18, %c0_19, %c0_20], %33 {strides = array<i32>} : memref<1x8x128xf32, #tpu.memory_space<vmem>>, vector<1x8x128xf32>,
    } else {
    }
    %c0 = arith.constant 0 : index
    %c0_1 = arith.constant 0 : index
    %c0_2 = arith.constant 0 : index
    %3 = vector.load %arg4[%c0, %c0_1, %c0_2] : memref<1x8x128xf32, #tpu.memory_space<vmem>>, vector<1x8x128xf32>
    %4 = vector.shape_cast %3 : vector<1x8x128xf32> to vector<8x128xf32>
    %c0_3 = arith.constant 0 : index
    %c0_4 = arith.constant 0 : index
    %c0_5 = arith.constant 0 : index
    %5 = vector.load %arg2[%c0_3, %c0_4, %c0_5] : memref<1x8x128xf32, #tpu.memory_space<vmem>>, vector<1x8x128xf32>
    %6 = vector.shape_cast %5 : vector<1x8x128xf32> to vector<8x128xf32>
    %c0_6 = arith.constant 0 : index
    %c0_7 = arith.constant 0 : index
    %c0_8 = arith.constant 0 : index
    %7 = vector.load %arg3[%c0_6, %c0_7, %c0_8] : memref<1x8x128xf32, #tpu.memory_space<vmem>>, vector<1x8x128xf32>
    %8 = vector.shape_cast %7 : vector<1x8x128xf32> to vector<8x128xf32>
    %cst = arith.constant 2.000000e+00 : f32
    %9 = vector.broadcast %cst : f32 to vector<8x128xf32>
    %10 = arith.mulf %9, %8 : vector<8x128xf32>
    %11 = math.log %6 : vector<8x128xf32>
    %12 = arith.mulf %10, %11 : vector<8x128xf32>
    %cst_9 = arith.constant 1.000000e+00 : f32
    %13 = vector.broadcast %cst_9 : f32 to vector<8x128xf32>
    %14 = arith.subf %13, %8 : vector<8x128xf32>
    %cst_10 = arith.constant 5.000000e-01 : f32
    %15 = vector.broadcast %cst_10 : f32 to vector<8x128xf32>
    %16 = arith.mulf %15, %14 : vector<8x128xf32>
    %cst_11 = arith.constant 1.000000e+00 : f32
    %17 = vector.broadcast %cst_11 : f32 to vector<8x128xf32>
    %18 = arith.subf %17, %6 : vector<8x128xf32>
    %19 = math.log %18 : vector<8x128xf32>
    %20 = arith.mulf %16, %19 : vector<8x128xf32>
    %21 = arith.addf %12, %20 : vector<8x128xf32>
    %cst_12 = arith.constant 0.000000e+00 : f32
    %22 = vector.broadcast %cst_12 : f32 to vector<8x128xf32>
    %23 = arith.subf %22, %21 : vector<8x128xf32>
    %24 = vector.shape_cast %23 : vector<8x128xf32> to vector<1x8x128xf32>
    %cst_13 = arith.constant dense<0.000000e+00> : vector<8x128xf32>
    %25 = vector.multi_reduction <add>, %24, %cst_13 [0] : vector<1x8x128xf32> to vector<8x128xf32>
    %26 = arith.addf %4, %25 : vector<8x128xf32>
    %c0_14 = arith.constant 0 : index
    %c0_15 = arith.constant 0 : index
    %c0_16 = arith.constant 0 : index
    %27 = vector.load %arg4[%c0_14, %c0_15, %c0_16] : memref<1x8x128xf32, #tpu.memory_space<vmem>>, vector<1x8x128xf32>
    %28 = vector.shape_cast %27 : vector<1x8x128xf32> to vector<8x128xf32>
    %29 = vector.shape_cast %26 : vector<8x128xf32> to vector<1x8x128xf32>
    tpu.vector_store %arg4[%c0_14, %c0_15, %c0_16], %29 {strides = array<i32>} : memref<1x8x128xf32, #tpu.memory_space<vmem>>, vector<1x8x128xf32>,
    return
  }
  func.func @transform_0(%arg0: i32, %arg1: i32) -> (i32, i32, i32) {
    %c0_i32 = arith.constant 0 : i32
    %c0_i32_0 = arith.constant 0 : i32
    return %arg0, %arg1, %c0_i32 : i32, i32, i32
  }
  func.func @transform_1(%arg0: i32, %arg1: i32) -> (i32, i32, i32) {
    %c0_i32 = arith.constant 0 : i32
    %c0_i32_0 = arith.constant 0 : i32
    return %arg0, %arg1, %c0_i32 : i32, i32, i32
  }
  func.func @transform_2(%arg0: i32, %arg1: i32) -> (i32, i32, i32) {
    %c0_i32 = arith.constant 0 : i32
    %c0_i32_0 = arith.constant 0 : i32
    %c0_i32_1 = arith.constant 0 : i32
    return %arg0, %c0_i32, %c0_i32_0 : i32, i32, i32
  }
}

</mosaic_0001>

<llo_original>
// kernel: weighted_bce_loss.1
$region0: #{weighted_bce_loss.1}
  #allocation0 [shape = 'u32[]', space=smem, size = 0x4, offset = 0x4, fixed_abs, tag = 'smem constant byte address 0x4 - core index']
  #allocation1 [shape = 'u32[144,128]{1,0:T(1,128)}', space=vmem, size = 0x12000, scoped, tag = 'internal scratch']
  %s0 = inlined_call_operand.vmem [shape: f32[2,8,128], index: 0, kind: input, shape index: {}]
  %s1 = inlined_call_operand.vmem [shape: f32[2,8,128], index: 1, kind: input, shape index: {}]
  %s2 = inlined_call_operand.vmem [shape: f32[2,8,128], index: 2, kind: output, shape index: {}]
  %s3 = sld [smem:[#allocation0]]
  $region45: #{weighted_bce_loss.1} parent=0
    _
  %s5 = ssub.s32 1, %s3
  %s6 = scalar_select 0, %s5, %s3
  loop: start=0, step=1, limit=4
  $region2: #{weighted_bce_loss.1} parent=0 // loop_pre_header
    _
  $region3: #{weighted_bce_loss.1} parent=0 // loop_header
    %s8 = sphi 0, %s12
    %p9 = scmp.ge.s32.totalorder %s8, 4
    %s15 = sphi 0, %s27
    %s16 = sphi 0, %s23
    %s17 = sphi 0, %s15
    %s18 = sphi 0, %s16
    %s19 = sphi 0, %s17
    %s20 = sphi 0, %s18
    %s32 = sphi 0, %s34
    %s35 = sphi 0, %s32
    %s36 = sphi 0, %s35
    %s52 = sphi 0, %s36
    %s60 = sphi 0, %s62
    %s63 = sphi 0, %s60
    %s64 = sphi 0, %s63
    %s80 = sphi 0, %s64
    %s86 = sphi 0, %s88
    %s89 = sphi 0, %s86
    %s90 = sphi 0, %s89
    %s106 = sphi 0, %s90
  $region4: #{weighted_bce_loss.1} parent=0 // loop_header_branch
    %11 = sbr.rel (%p9) target = $region8
  $region5: #{weighted_bce_loss.1} parent=0 // loop_body
    %s13 = ssub.s32 %s8, 1
    %s14 = ssub.s32 %s8, 2
    %s21 = sadd.s32 1, %s16
    %p22 = scmp.ge.s32.totalorder %s21, 1
    %s23 = scalar_select %p22, 0, %s21
    %s24 = sadd.s32 1, %s15
    %s25 = scalar_select %p22, %s24, %s15
    %p26 = scmp.ge.s32.totalorder %s25, 2
    %s27 = scalar_select %p26, 0, %s25
    %s28 = ssub.s32 %s15, %s27
    %s29 = ssub.s32 %s16, %s23
    %s30 = sor.u32 %s28, %s29
    %p31 = scmp.eq.s32.totalorder %s30, 0
    %s33 = sadd.s32 %s32, 1
    %s34 = scalar_select %p31, %s32, %s33
    %p37 = pneg %p31
    %p38 = scmp.eq.s32.totalorder %s8, 1
    %p39 = por %p37, %p38
    %p40 = scmp.ne.s32.totalorder %s32, %s35
    %p41 = scmp.eq.s32.totalorder %s8, 0
    %p42 = por %p40, %p41
    %p43 = scmp.ne.s32.totalorder %s32, %s35
    %p44 = scmp.eq.s32.totalorder %s13, 1
    %p45 = por %p43, %p44
    %p46 = scmp.ne.s32.totalorder %s35, %s36
    %p47 = scmp.eq.s32.totalorder %s13, 0
    %p48 = por %p46, %p47
    %p49 = scmp.ne.s32.totalorder %s35, %s36
    %p50 = scmp.eq.s32.totalorder %s14, 1
    %p51 = por %p49, %p50
    %p53 = scmp.ne.s32.totalorder %s36, %s52
    %p54 = scmp.eq.s32.totalorder %s14, 0
    %p55 = por %p53, %p54
    %s56 = ssub.s32 %s15, %s27
    %s57 = ssub.s32 %s16, %s23
    %s58 = sor.u32 %s56, %s57
    %p59 = scmp.eq.s32.totalorder %s58, 0
    %s61 = sadd.s32 %s60, 1
    %s62 = scalar_select %p59, %s60, %s61
    %p65 = pneg %p59
    %p66 = scmp.eq.s32.totalorder %s8, 1
    %p67 = por %p65, %p66
    %p68 = scmp.ne.s32.totalorder %s60, %s63
    %p69 = scmp.eq.s32.totalorder %s8, 0
    %p70 = por %p68, %p69
    %p71 = scmp.ne.s32.totalorder %s60, %s63
    %p72 = scmp.eq.s32.totalorder %s13, 1
    %p73 = por %p71, %p72
    %p74 = scmp.ne.s32.totalorder %s63, %s64
    %p75 = scmp.eq.s32.totalorder %s13, 0
    %p76 = por %p74, %p75
    %p77 = scmp.ne.s32.totalorder %s63, %s64
    %p78 = scmp.eq.s32.totalorder %s14, 1
    %p79 = por %p77, %p78
    %p81 = scmp.ne.s32.totalorder %s64, %s80
    %p82 = scmp.eq.s32.totalorder %s14, 0
    %p83 = por %p81, %p82
    %s84 = ssub.s32 %s15, %s27
    %p85 = scmp.eq.s32.totalorder %s84, 0
    %s87 = sadd.s32 %s86, 1
    %s88 = scalar_select %p85, %s86, %s87
    %p91 = pneg %p85
    %p92 = scmp.eq.s32.totalorder %s8, 1
    %p93 = por %p91, %p92
    %p94 = scmp.ne.s32.totalorder %s86, %s89
    %p95 = scmp.eq.s32.totalorder %s8, 0
    %p96 = por %p94, %p95
    %p97 = scmp.ne.s32.totalorder %s86, %s89
    %p98 = scmp.eq.s32.totalorder %s13, 1
    %p99 = por %p97, %p98
    %p100 = scmp.ne.s32.totalorder %s89, %s90
    %p101 = scmp.eq.s32.totalorder %s13, 0
    %p102 = por %p100, %p101
    %p103 = scmp.ne.s32.totalorder %s89, %s90
    %p104 = scmp.eq.s32.totalorder %s14, 1
    %p105 = por %p103, %p104
    %p107 = scmp.ne.s32.totalorder %s90, %s106
    %p108 = scmp.eq.s32.totalorder %s14, 0
    %p109 = por %p107, %p108
    %p110 = scmp.le.s32.totalorder 1, %s8
    %p111 = scmp.lt.s32.totalorder %s8, 3
    %p112 = pnand %p110, %p111
    %p113 = pneg %p112
    // Predicated region
    $region9: #{weighted_bce_loss.1} parent=5 // pred_check
      _
    $region10: #{weighted_bce_loss.1} parent=5 // pred_check_branch
      %115 = sbr.rel (%p112) target = $region12
    $region11: #{weighted_bce_loss.1} parent=5 // pred_region
      %s116 = ssub.s32 %s8, 1
    $region12: #{weighted_bce_loss.1} parent=5 // pred_fallthru
      _
    %p117 = scmp.lt.s32.totalorder %s8, 2
    // Predicated region
    $region13: #{weighted_bce_loss.1} parent=5 // pred_check
      %p118 = pneg %p117
    $region14: #{weighted_bce_loss.1} parent=5 // pred_check_branch
      %120 = sbr.rel (%p118) target = $region16
    $region15: #{weighted_bce_loss.1} parent=5 // pred_region
      // Predicated region
      $region17: #{weighted_bce_loss.1} parent=15 // pred_check
        %p121 = pneg %p42
      $region18: #{weighted_bce_loss.1} parent=15 // pred_check_branch
        %123 = sbr.rel (%p121) target = $region20
      $region19: #{weighted_bce_loss.1} parent=15 // pred_region
        %p124 = scmp.lt.s32.totalorder %s15, 1
        %s125 = scalar_select %p124, %s15, 1
        %p126 = scmp.lt.s32.totalorder %s16, 0
        %s127 = scalar_select %p126, %s16, 0
        %s128 = sadd.s32 %s127, %s125
        %s129 = smul.addr %s128, 8
        %s130 = scalar_lea.vmem %s0, %s129
      $region20: #{weighted_bce_loss.1} parent=15 // pred_fallthru
        _
      // Predicated region
      $region21: #{weighted_bce_loss.1} parent=15 // pred_check
        %p131 = pneg %p70
      $region22: #{weighted_bce_loss.1} parent=15 // pred_check_branch
        %133 = sbr.rel (%p131) target = $region24
      $region23: #{weighted_bce_loss.1} parent=15 // pred_region
        %p134 = scmp.lt.s32.totalorder %s15, 1
        %s135 = scalar_select %p134, %s15, 1
        %p136 = scmp.lt.s32.totalorder %s16, 0
        %s137 = scalar_select %p136, %s16, 0
        %s138 = sadd.s32 %s137, %s135
        %s139 = smul.addr %s138, 8
        %s140 = scalar_lea.vmem %s1, %s139
      $region24: #{weighted_bce_loss.1} parent=15 // pred_fallthru
        _
    $region16: #{weighted_bce_loss.1} parent=5 // pred_fallthru
      _
    %p141 = scmp.le.s32.totalorder 1, %s8
    %p142 = scmp.lt.s32.totalorder %s8, 3
    %p143 = pnand %p141, %p142
    %p144 = pneg %p143
    // Predicated region
    $region25: #{weighted_bce_loss.1} parent=5 // pred_check
      _
    $region26: #{weighted_bce_loss.1} parent=5 // pred_check_branch
      %146 = sbr.rel (%p143) target = $region28
    $region27: #{weighted_bce_loss.1} parent=5 // pred_region
      %s147 = ssub.s32 %s8, 1
      %p148 = scmp.lt.s32.totalorder %s17, 1
      %s149 = scalar_select %p148, %s17, 1
      %p150 = scmp.lt.s32.totalorder %s18, 0
      %s151 = scalar_select %p150, %s18, 0
      %s152 = sadd.s32 %s151, %s149
      %s153 = smul.addr %s152, 8
      %s154 = scalar_lea.vmem %s0, %s153
      %p155 = pneg %p48
      %p156 = pneg %p45
      %p157 = scmp.lt.s32.totalorder %s17, 1
      %s158 = scalar_select %p157, %s17, 1
      %p159 = scmp.lt.s32.totalorder %s18, 0
      %s160 = scalar_select %p159, %s18, 0
      %s161 = sadd.s32 %s160, %s158
      %s162 = smul.addr %s161, 8
      %s163 = scalar_lea.vmem %s1, %s162
      %p164 = pneg %p76
      %p165 = pneg %p73
      %p166 = pneg %p102
      %p167 = pneg %p99
      %p168 = scmp.lt.s32.totalorder %s17, 1
      %s169 = scalar_select %p168, %s17, 1
      %s170 = smul.addr %s169, 8
      %s171 = scalar_lea.vmem %s2, %s170
      %p172 = scmp.lt.s32.totalorder %s17, 1
      %s173 = scalar_select %p172, %s17, 1
      %p174 = scmp.lt.s32.totalorder %s18, 0
      %s175 = scalar_select %p174, %s18, 0
      %s176 = sadd.s32 %s175, %s173
      %s177 = smul.addr %s176, 8
      %s178 = scalar_lea.vmem %s0, %s177
      %p179 = scmp.lt.s32.totalorder %s17, 1
      %s180 = scalar_select %p179, %s17, 1
      %p181 = scmp.lt.s32.totalorder %s18, 0
      %s182 = scalar_select %p181, %s18, 0
      %s183 = sadd.s32 %s182, %s180
      %s184 = smul.addr %s183, 8
      %s185 = scalar_lea.vmem %s1, %s184
      %p186 = scmp.lt.s32.totalorder %s17, 1
      %s187 = scalar_select %p186, %s17, 1
      %s188 = smul.addr %s187, 8
      %s189 = scalar_lea.vmem %s2, %s188
      %p190 = scmp.eq.s32.totalorder %s18, 0
      // Predicated region
      $region29: #{weighted_bce_loss.1} parent=27 // pred_check
        %p191 = pneg %p190
      $region30: #{weighted_bce_loss.1} parent=27 // pred_check_branch
        %193 = sbr.rel (%p191) target = $region32
      $region31: #{weighted_bce_loss.1} parent=27 // pred_region
        %194 = vst [vmem:[%s189] sm:$0xff] 0.0
      $region32: #{weighted_bce_loss.1} parent=27 // pred_fallthru
        _
      %v195 = vld [vmem:[%s189] sm:$0xff]
      %v196 = vld [vmem:[%s178] sm:$0xff]
      %v197 = vld [vmem:[%s185] sm:$0xff]
      %v198 = vmul.f32 %v197, 2.0
      %v199 = vlog2.pop %v196
      %v200 = vmul.f32 %v199, 0.6931472
      %v201 = vmul.f32 %v198, %v200
      %v202 = vsub.f32 1.0, %v197
      %v203 = vmul.f32 %v202, 0.5
      %v204 = vsub.f32 1.0, %v196
      %v205 = vlog2.pop %v204
      %v206 = vmul.f32 %v205, 0.6931472
      %v207 = vmul.f32 %v203, %v206
      %v208 = vadd.f32 %v201, %v207
      %v209 = vsub.f32 0.0, %v208
      %v210 = vadd.f32 %v209, 0.0
      %v211 = vadd.f32 %v195, %v210
      %212 = vst [vmem:[%s189] sm:$0xff] %v211
      %p213 = scmp.lt.s32.totalorder %s17, 1
      %s214 = scalar_select %p213, %s17, 1
      %s215 = smul.addr %s214, 8
      %s216 = scalar_lea.vmem %s2, %s215
      // Predicated region
      $region33: #{weighted_bce_loss.1} parent=27 // pred_check
        %p217 = pneg %p99
      $region34: #{weighted_bce_loss.1} parent=27 // pred_check_branch
        %219 = sbr.rel (%p217) target = $region36
      $region35: #{weighted_bce_loss.1} parent=27 // pred_region
        _
      $region36: #{weighted_bce_loss.1} parent=27 // pred_fallthru
        _
    $region28: #{weighted_bce_loss.1} parent=5 // pred_fallthru
      _
    %p220 = scmp.le.s32.totalorder 2, %s8
    // Predicated region
    $region37: #{weighted_bce_loss.1} parent=5 // pred_check
      %p221 = pneg %p220
    $region38: #{weighted_bce_loss.1} parent=5 // pred_check_branch
      %223 = sbr.rel (%p221) target = $region40
    $region39: #{weighted_bce_loss.1} parent=5 // pred_region
      %s224 = ssub.s32 %s8, 2
      // Predicated region
      $region41: #{weighted_bce_loss.1} parent=39 // pred_check
        %p225 = pneg %p105
      $region42: #{weighted_bce_loss.1} parent=39 // pred_check_branch
        %227 = sbr.rel (%p225) target = $region44
      $region43: #{weighted_bce_loss.1} parent=39 // pred_region
        %p228 = scmp.lt.s32.totalorder %s19, 1
        %s229 = scalar_select %p228, %s19, 1
        %s230 = smul.addr %s229, 8
        %s231 = scalar_lea.vmem %s2, %s230
      $region44: #{weighted_bce_loss.1} parent=39 // pred_fallthru
        _
    $region40: #{weighted_bce_loss.1} parent=5 // pred_fallthru
      _
  $region6: #{weighted_bce_loss.1} parent=0 // loop_footer
    %s12 = sadd.s32 1, %s8
  $region7: #{weighted_bce_loss.1} parent=0 // loop_footer_branch
    %7 = sbr.rel target = $region3
  $region8: #{weighted_bce_loss.1} parent=0 // loop_exit
    _

</llo_original>
